<compile_context>
chip_gen: v7x
topology: tpu7x:2x2x1
jax: 0.10.0
libtpu: 0.0.40
codegen_flags: <defaults>
</compile_context>

<pallas_src>
import jax
import jax.numpy as jnp
from jax.experimental import pallas as pl
from jax.experimental.pallas import tpu as pltpu


def attention_kernel(q_ref, mem_ref, sh_ref,
                     wq_ref, wm_ref, wloc_ref, wv_ref, bias_ref,
                     ctx_ref, aw_ref):
    # Per grid step (one batch tile):
    #   q_ref    : (Bt, D)      queries
    #   mem_ref  : (Bt, T, E)   memory
    #   sh_ref   : (Bt, T, K)   im2col of padded cumulative attention weights
    #   weights  : pre-transposed / pre-folded, replicated across the grid:
    #     wq (D,A), wm (E,A), wloc (K,A) = conv_w^T @ W_loc^T,
    #     wv (1,A), bias (1,A)
    Bt, T, E = mem_ref.shape
    K = wloc_ref.shape[0]
    A = wq_ref.shape[1]

    mem = mem_ref[...]                                            # (Bt, T, E)
    mem2d = mem.reshape(Bt * T, E)

    # key = memory @ W_mem^T            -> one fused (Bt*T, E) @ (E, A) matmul
    key = jnp.dot(mem2d, wm_ref[...], preferred_element_type=jnp.float32)

    # processed query = query @ W_q^T   -> (Bt, A)
    qp = jnp.dot(q_ref[...], wq_ref[...], preferred_element_type=jnp.float32)

    # location path: im2col'd conv + location dense folded into ONE matmul
    #   (Bt*T, K) @ (K, A)
    sh2d = sh_ref[...].reshape(Bt * T, K)
    loc = jnp.dot(sh2d, wloc_ref[...], preferred_element_type=jnp.float32)

    # e = tanh(query + location + key + folded_bias)   -> (Bt, T, A)
    s = (key + loc).reshape(Bt, T, A) + qp[:, None, :] + bias_ref[...]
    e = jnp.tanh(s)

    # energies = <e, v> : VPU multiply + cross-lane reduce (no N=1 matmul);
    # the +b_v of the original module is dropped (softmax shift-invariant).
    energies = jnp.sum(e * wv_ref[...], axis=-1)                  # (Bt, T)

    # softmax over time T (per batch row)
    m = jnp.max(energies, axis=-1, keepdims=True)
    p = jnp.exp(energies - m)
    denom = jnp.sum(p, axis=-1, keepdims=True)
    aw = p * pl.reciprocal(denom, approx=True)                    # (Bt, T)

    # context = attention_weights @ memory  (batched, q = 1)
    ctx = jnp.einsum('bqt,bte->bqe', aw[:, None, :], mem,
                     preferred_element_type=jnp.float32)[:, 0, :]  # (Bt, E)

    ctx_ref[...] = ctx.astype(ctx_ref.dtype)
    aw_ref[...] = aw.astype(aw_ref.dtype)


def _choose_batch_tile(B, max_bt=8):
    """Whole batch if small; otherwise a multiple-of-8 divisor (layout rule)."""
    if B <= max_bt:
        return B
    for bt in range(max_bt, 0, -1):
        if B % bt == 0 and bt % 8 == 0:
            return bt
    return B


def attention_forward(params, query, memory, attention_weights_cum,
                      *, max_batch_tile=8):
    """Pallas-backed forward of the Attention module (mask=None)."""
    B, T, E = memory.shape
    D = query.shape[1]
    A = params["W_q"].shape[0]
    K = params["conv_w"].shape[2]
    assert K % 2 == 1, "ConvNorm default padding assumes odd kernel_size"
    pad = (K - 1) // 2

    f32 = jnp.float32
    query = query.astype(f32)
    memory = memory.astype(f32)

    # Tiny im2col for the 1-input-channel 'same' conv, built once in XLA:
    #   shifted[b, t, k] = x_padded[b, 0, t + k]
    xpad = jnp.pad(attention_weights_cum.astype(f32),
                   ((0, 0), (0, 0), (pad, pad)))
    shifted = jnp.stack([xpad[:, 0, k:k + T] for k in range(K)], axis=-1)  # (B,T,K)

    # Pre-transpose / pre-fold weights to the orientation the kernel consumes.
    wq = params["W_q"].T.astype(f32)                    # (D, A)
    wm = params["W_mem"].T.astype(f32)                  # (E, A)
    # Fold conv weight into the location dense weight: (K, F) @ (F, A) -> (K, A)
    wloc = (params["conv_w"][:, 0, :].T @ params["W_loc"].T).astype(f32)
    wv = params["W_v"].astype(f32).reshape(1, A)        # (1, A)
    # Fold all pre-tanh biases into one (1, A) vector; drop b_v entirely.
    bias_all = (params["b_q"] + params["b_mem"]
                + params["conv_b"] @ params["W_loc"].T).astype(f32).reshape(1, A)

    Bt = _choose_batch_tile(B, max_batch_tile)
    grid = (B // Bt,)

    rep2 = lambda shape: pl.BlockSpec(shape, lambda i: (0, 0))

    ctx, aw = pl.pallas_call(
        attention_kernel,
        out_shape=(jax.ShapeDtypeStruct((B, E), f32),
                   jax.ShapeDtypeStruct((B, T), f32)),
        grid_spec=pltpu.PrefetchScalarGridSpec(
            num_scalar_prefetch=0,
            grid=grid,
            in_specs=[
                pl.BlockSpec((Bt, D), lambda i: (i, 0)),          # query tile
                pl.BlockSpec((Bt, T, E), lambda i: (i, 0, 0)),    # memory tile
                pl.BlockSpec((Bt, T, K), lambda i: (i, 0, 0)),    # im2col tile
                rep2((D, A)),                                     # W_q^T
                rep2((E, A)),                                     # W_mem^T
                rep2((K, A)),                                     # folded loc weight
                rep2((1, A)),                                     # v
                rep2((1, A)),                                     # folded bias
            ],
            out_specs=[
                pl.BlockSpec((Bt, E), lambda i: (i, 0)),          # context
                pl.BlockSpec((Bt, T), lambda i: (i, 0)),          # attention weights
            ],
        ),
        compiler_params=pltpu.CompilerParams(
            dimension_semantics=("parallel",)),
    )(query, memory, shifted, wq, wm, wloc, wv, bias_all)
    return ctx, aw


def reference_forward(params, query, memory, attention_weights_cum):
    """Pure-JAX reference matching the PyTorch module (mask=None)."""
    key = jnp.einsum("bte,ae->bta", memory, params["W_mem"]) + params["b_mem"]
    qp = jnp.einsum("bd,ad->ba", query, params["W_q"]) + params["b_q"]
    qp = qp[:, None, :]                                          # (B,1,A)
    K = params["conv_w"].shape[2]
    pad = (K - 1) // 2
    xpad = jnp.pad(attention_weights_cum, ((0, 0), (0, 0), (pad, pad)))
    T = memory.shape[1]
    shifted = jnp.stack([xpad[:, 0, k:k + T] for k in range(K)], axis=1)  # (B,K,T)
    conv = jnp.einsum("fk,bkt->bft", params["conv_w"][:, 0, :], shifted) \
        + params["conv_b"][None, :, None]                        # (B,F,T)
    loc = jnp.einsum("bft,af->bta", conv, params["W_loc"])       # (B,T,A)
    e = jnp.tanh(qp + loc + key)
    energies = jnp.einsum("bta,oa->bto", e, params["W_v"]) + params["b_v"]
    energies = energies[..., 0]                                  # (B,T)
    aw = jax.nn.softmax(energies, axis=1)
    ctx = jnp.einsum("bt,bte->be", aw, memory)
    return ctx, aw


def init_params(key, query_dim, memory_dim, attention_dim, n_filters, kernel_size):
    ks = jax.random.split(key, 8)
    s = 0.1
    return {
        "W_q":    s * jax.random.normal(ks[0], (attention_dim, query_dim), jnp.float32),
        "b_q":    s * jax.random.normal(ks[1], (attention_dim,), jnp.float32),
        "W_mem":  s * jax.random.normal(ks[2], (attention_dim, memory_dim), jnp.float32),
        "b_mem":  s * jax.random.normal(ks[3], (attention_dim,), jnp.float32),
        "conv_w": s * jax.random.normal(ks[4], (n_filters, 1, kernel_size), jnp.float32),
        "conv_b": s * jax.random.normal(ks[5], (n_filters,), jnp.float32),
        "W_loc":  s * jax.random.normal(ks[6], (attention_dim, n_filters), jnp.float32),
        "W_v":    s * jax.random.normal(ks[7], (1, attention_dim), jnp.float32),
        "b_v":    jnp.zeros((1,), jnp.float32),
    }


if __name__ == "__main__":
    B, T = 2, 16
    query_dim, memory_dim, attention_dim = 16, 32, 32
    n_filters, kernel_size = 8, 5

    root = jax.random.PRNGKey(0)
    kp, kq, km, kw = jax.random.split(root, 4)
    params = init_params(kp, query_dim, memory_dim, attention_dim,
                         n_filters, kernel_size)

    query = jax.random.normal(kq, (B, query_dim), jnp.float32)
    memory = jax.random.normal(km, (B, T, memory_dim), jnp.float32)
    attention_weights_cum = jax.nn.softmax(
        jax.random.normal(kw, (B, 1, T), jnp.float32), axis=-1)

    ctx, aw = attention_forward(params, query, memory, attention_weights_cum)
    jax.block_until_ready((ctx, aw))

    ctx_ref, aw_ref = reference_forward(params, query, memory, attention_weights_cum)
    # tolerance widened slightly for the approximate (EUP) softmax reciprocal
    assert jnp.allclose(ctx, ctx_ref, rtol=2e-3, atol=2e-3)
    assert jnp.allclose(aw, aw_ref, rtol=2e-3, atol=2e-3)

    print("KERNEL_OK")
</pallas_src>

<mosaic_0001>
module attributes {stable_mosaic.version = 11 : i64} {
  func.func @attention_kernel(%arg0: i32, %arg1: memref<2x16xf32, #tpu.memory_space<vmem>>, %arg2: memref<2x16x32xf32, #tpu.memory_space<vmem>>, %arg3: memref<2x16x5xf32, #tpu.memory_space<vmem>>, %arg4: memref<16x32xf32, #tpu.memory_space<vmem>>, %arg5: memref<32x32xf32, #tpu.memory_space<vmem>>, %arg6: memref<5x32xf32, #tpu.memory_space<vmem>>, %arg7: memref<1x32xf32, #tpu.memory_space<vmem>>, %arg8: memref<1x32xf32, #tpu.memory_space<vmem>>, %arg9: memref<2x32xf32, #tpu.memory_space<vmem>>, %arg10: memref<2x16xf32, #tpu.memory_space<vmem>>) attributes {dimension_semantics = [#tpu.dimension_semantics<parallel>], iteration_bounds = array<i64: 1>, scalar_prefetch = 0 : i64, scratch_operands = 0 : i64, tpu.core_type = #tpu.core_type<tc>, window_params = [{transform_indices = @transform_0, window_bounds = array<i64: 2, 16>}, {transform_indices = @transform_1, window_bounds = array<i64: 2, 16, 32>}, {transform_indices = @transform_2, window_bounds = array<i64: 2, 16, 5>}, {pipeline_mode = #tpu.pipeline_mode<synchronous>, transform_indices = @transform_3, window_bounds = array<i64: 16, 32>}, {pipeline_mode = #tpu.pipeline_mode<synchronous>, transform_indices = @transform_4, window_bounds = array<i64: 32, 32>}, {pipeline_mode = #tpu.pipeline_mode<synchronous>, transform_indices = @transform_5, window_bounds = array<i64: 5, 32>}, {pipeline_mode = #tpu.pipeline_mode<synchronous>, transform_indices = @transform_6, window_bounds = array<i64: 1, 32>}, {pipeline_mode = #tpu.pipeline_mode<synchronous>, transform_indices = @transform_7, window_bounds = array<i64: 1, 32>}, {transform_indices = @transform_8, window_bounds = array<i64: 2, 32>}, {transform_indices = @transform_9, window_bounds = array<i64: 2, 16>}]} {
    %c0 = arith.constant 0 : index
    %c0_0 = arith.constant 0 : index
    %c0_1 = arith.constant 0 : index
    %0 = vector.load %arg2[%c0, %c0_0, %c0_1] : memref<2x16x32xf32, #tpu.memory_space<vmem>>, vector<2x16x32xf32>
    %1 = vector.shape_cast %0 : vector<2x16x32xf32> to vector<32x32xf32>
    %c0_2 = arith.constant 0 : index
    %c0_3 = arith.constant 0 : index
    %2 = vector.load %arg5[%c0_2, %c0_3] : memref<32x32xf32, #tpu.memory_space<vmem>>, vector<32x32xf32>
    %cst = arith.constant dense<0.000000e+00> : vector<32x32xf32>
    %3 = tpu.matmul %1, %2, %cst {dimension_numbers = #tpu.dot_dimension_numbers<[1], [0], [0], [1], [0, 0, 1, 1], [], []>} : vector<32x32xf32>, vector<32x32xf32>, vector<32x32xf32> -> vector<32x32xf32>
    %c0_4 = arith.constant 0 : index
    %c0_5 = arith.constant 0 : index
    %4 = vector.load %arg1[%c0_4, %c0_5] : memref<2x16xf32, #tpu.memory_space<vmem>>, vector<2x16xf32>
    %c0_6 = arith.constant 0 : index
    %c0_7 = arith.constant 0 : index
    %5 = vector.load %arg4[%c0_6, %c0_7] : memref<16x32xf32, #tpu.memory_space<vmem>>, vector<16x32xf32>
    %cst_8 = arith.constant dense<0.000000e+00> : vector<2x32xf32>
    %6 = tpu.matmul %4, %5, %cst_8 {dimension_numbers = #tpu.dot_dimension_numbers<[1], [0], [0], [1], [0, 0, 1, 1], [], []>} : vector<2x16xf32>, vector<16x32xf32>, vector<2x32xf32> -> vector<2x32xf32>
    %c0_9 = arith.constant 0 : index
    %c0_10 = arith.constant 0 : index
    %c0_11 = arith.constant 0 : index
    %7 = vector.load %arg3[%c0_9, %c0_10, %c0_11] : memref<2x16x5xf32, #tpu.memory_space<vmem>>, vector<2x16x5xf32>
    %8 = vector.shape_cast %7 : vector<2x16x5xf32> to vector<32x5xf32>
    %c0_12 = arith.constant 0 : index
    %c0_13 = arith.constant 0 : index
    %9 = vector.load %arg6[%c0_12, %c0_13] : memref<5x32xf32, #tpu.memory_space<vmem>>, vector<5x32xf32>
    %cst_14 = arith.constant dense<0.000000e+00> : vector<32x32xf32>
    %10 = tpu.matmul %8, %9, %cst_14 {dimension_numbers = #tpu.dot_dimension_numbers<[1], [0], [0], [1], [0, 0, 1, 1], [], []>} : vector<32x5xf32>, vector<5x32xf32>, vector<32x32xf32> -> vector<32x32xf32>
    %11 = arith.addf %3, %10 : vector<32x32xf32>
    %12 = vector.shape_cast %11 : vector<32x32xf32> to vector<2x16x32xf32>
    %13 = vector.shape_cast %6 : vector<2x32xf32> to vector<2x1x32xf32>
    %14 = vector.broadcast %13 : vector<2x1x32xf32> to vector<2x16x32xf32>
    %15 = arith.addf %12, %14 : vector<2x16x32xf32>
    %c0_15 = arith.constant 0 : index
    %c0_16 = arith.constant 0 : index
    %16 = vector.load %arg8[%c0_15, %c0_16] : memref<1x32xf32, #tpu.memory_space<vmem>>, vector<1x32xf32>
    %17 = vector.shape_cast %16 : vector<1x32xf32> to vector<1x1x32xf32>
    %18 = vector.broadcast %17 : vector<1x1x32xf32> to vector<2x16x32xf32>
    %19 = arith.addf %15, %18 : vector<2x16x32xf32>
    %20 = math.tanh %19 : vector<2x16x32xf32>
    %c0_17 = arith.constant 0 : index
    %c0_18 = arith.constant 0 : index
    %21 = vector.load %arg7[%c0_17, %c0_18] : memref<1x32xf32, #tpu.memory_space<vmem>>, vector<1x32xf32>
    %22 = vector.shape_cast %21 : vector<1x32xf32> to vector<1x1x32xf32>
    %23 = vector.broadcast %22 : vector<1x1x32xf32> to vector<2x16x32xf32>
    %24 = arith.mulf %20, %23 : vector<2x16x32xf32>
    %cst_19 = arith.constant dense<0.000000e+00> : vector<2x16xf32>
    %25 = vector.multi_reduction <add>, %24, %cst_19 [2] : vector<2x16x32xf32> to vector<2x16xf32>
    %cst_20 = arith.constant dense<0xFF800000> : vector<2xf32>
    %26 = vector.multi_reduction <maximumf>, %25, %cst_20 [1] : vector<2x16xf32> to vector<2xf32>
    %27 = vector.shape_cast %26 : vector<2xf32> to vector<2x1xf32>
    %28 = vector.broadcast %27 : vector<2x1xf32> to vector<2x16xf32>
    %29 = arith.subf %25, %28 : vector<2x16xf32>
    %30 = math.exp %29 : vector<2x16xf32>
    %cst_21 = arith.constant dense<0.000000e+00> : vector<2xf32>
    %31 = vector.multi_reduction <add>, %30, %cst_21 [1] : vector<2x16xf32> to vector<2xf32>
    %32 = vector.shape_cast %31 : vector<2xf32> to vector<2x1xf32>
    %33 = tpu.reciprocal %32 {approx = true} : vector<2x1xf32> -> vector<2x1xf32>
    %34 = vector.broadcast %33 : vector<2x1xf32> to vector<2x16xf32>
    %35 = arith.mulf %30, %34 : vector<2x16xf32>
    %36 = vector.shape_cast %35 : vector<2x16xf32> to vector<2x1x16xf32>
    "tpu.trace_start"() <{level = 10 : i32, message = "bqt,bte->bqe"}> : () -> ()
    %cst_22 = arith.constant dense<0.000000e+00> : vector<2x1x32xf32>
    %37 = tpu.matmul %36, %0, %cst_22 {dimension_numbers = #tpu.dot_dimension_numbers<[2], [1], [1], [2], [0, 0, 0, 1, 1, 2], [0], [0]>} : vector<2x1x16xf32>, vector<2x16x32xf32>, vector<2x1x32xf32> -> vector<2x1x32xf32>
    "tpu.trace_stop"() : () -> ()
    %38 = vector.shape_cast %37 : vector<2x1x32xf32> to vector<2x32xf32>
    %c0_23 = arith.constant 0 : index
    %c0_24 = arith.constant 0 : index
    %39 = vector.load %arg9[%c0_23, %c0_24] : memref<2x32xf32, #tpu.memory_space<vmem>>, vector<2x32xf32>
    tpu.vector_store %arg9[%c0_23, %c0_24], %38 {strides = array<i32>} : memref<2x32xf32, #tpu.memory_space<vmem>>, vector<2x32xf32>,
    %c0_25 = arith.constant 0 : index
    %c0_26 = arith.constant 0 : index
    %40 = vector.load %arg10[%c0_25, %c0_26] : memref<2x16xf32, #tpu.memory_space<vmem>>, vector<2x16xf32>
    tpu.vector_store %arg10[%c0_25, %c0_26], %35 {strides = array<i32>} : memref<2x16xf32, #tpu.memory_space<vmem>>, vector<2x16xf32>,
    return
  }
  func.func @transform_0(%arg0: i32) -> (i32, i32) {
    %c0_i32 = arith.constant 0 : i32
    %c0_i32_0 = arith.constant 0 : i32
    return %arg0, %c0_i32 : i32, i32
  }
  func.func @transform_1(%arg0: i32) -> (i32, i32, i32) {
    %c0_i32 = arith.constant 0 : i32
    %c0_i32_0 = arith.constant 0 : i32
    %c0_i32_1 = arith.constant 0 : i32
    return %arg0, %c0_i32, %c0_i32_0 : i32, i32, i32
  }
  func.func @transform_2(%arg0: i32) -> (i32, i32, i32) {
    %c0_i32 = arith.constant 0 : i32
    %c0_i32_0 = arith.constant 0 : i32
    %c0_i32_1 = arith.constant 0 : i32
    return %arg0, %c0_i32, %c0_i32_0 : i32, i32, i32
  }
  func.func @transform_3(%arg0: i32) -> (i32, i32) {
    %c0_i32 = arith.constant 0 : i32
    %c0_i32_0 = arith.constant 0 : i32
    %c0_i32_1 = arith.constant 0 : i32
    return %c0_i32, %c0_i32_0 : i32, i32
  }
  func.func @transform_4(%arg0: i32) -> (i32, i32) {
    %c0_i32 = arith.constant 0 : i32
    %c0_i32_0 = arith.constant 0 : i32
    %c0_i32_1 = arith.constant 0 : i32
    return %c0_i32, %c0_i32_0 : i32, i32
  }
  func.func @transform_5(%arg0: i32) -> (i32, i32) {
    %c0_i32 = arith.constant 0 : i32
    %c0_i32_0 = arith.constant 0 : i32
    %c0_i32_1 = arith.constant 0 : i32
    return %c0_i32, %c0_i32_0 : i32, i32
  }
  func.func @transform_6(%arg0: i32) -> (i32, i32) {
    %c0_i32 = arith.constant 0 : i32
    %c0_i32_0 = arith.constant 0 : i32
    %c0_i32_1 = arith.constant 0 : i32
    return %c0_i32, %c0_i32_0 : i32, i32
  }
  func.func @transform_7(%arg0: i32) -> (i32, i32) {
    %c0_i32 = arith.constant 0 : i32
    %c0_i32_0 = arith.constant 0 : i32
    %c0_i32_1 = arith.constant 0 : i32
    return %c0_i32, %c0_i32_0 : i32, i32
  }
  func.func @transform_8(%arg0: i32) -> (i32, i32) {
    %c0_i32 = arith.constant 0 : i32
    %c0_i32_0 = arith.constant 0 : i32
    return %arg0, %c0_i32 : i32, i32
  }
  func.func @transform_9(%arg0: i32) -> (i32, i32) {
    %c0_i32 = arith.constant 0 : i32
    %c0_i32_0 = arith.constant 0 : i32
    return %arg0, %c0_i32 : i32, i32
  }
}

</mosaic_0001>

<llo_original>
// kernel: tpu_custom_call.1
$region0: #{tpu_custom_call.1}
  #allocation0 [shape = 'u32[]', space=smem, size = 0x4, offset = 0x4, fixed_abs, tag = 'smem constant byte address 0x4 - core index']
  #allocation1 [shape = 'u32[144,128]{1,0:T(1,128)}', space=vmem, size = 0x12000, scoped, tag = 'internal scratch']
  %s0 = inlined_call_operand.hbm [shape: f32[2,16], index: 0, kind: input, shape index: {}]
  %s1 = inlined_call_operand.vmem [shape: f32[2,16,32], index: 1, kind: input, shape index: {}]
  %s2 = inlined_call_operand.vmem [shape: f32[2,16,5], index: 2, kind: input, shape index: {}]
  %s3 = inlined_call_operand.vmem [shape: f32[16,32], index: 3, kind: input, shape index: {}]
  %s4 = inlined_call_operand.hbm [shape: f32[32,32], index: 4, kind: input, shape index: {}]
  %s5 = inlined_call_operand.vmem [shape: f32[5,32], index: 5, kind: input, shape index: {}]
  %s6 = inlined_call_operand.vmem [shape: f32[1,32], index: 6, kind: input, shape index: {}]
  %s7 = inlined_call_operand.vmem [shape: f32[1,32], index: 7, kind: input, shape index: {}]
  %s8 = inlined_call_operand.hbm [shape: f32[2,32], index: 8, kind: output, shape index: {0}]
  %s9 = inlined_call_operand.hbm [shape: f32[2,16], index: 9, kind: output, shape index: {1}]
  %10 = xla_tuple %s8, %s9
  %s11 = sld [smem:[#allocation0]]
  $region58: #{tpu_custom_call.1} parent=0
    _
  %s13 = ssub.s32 1, %s11
  %s14 = scalar_select 0, %s13, %s11
  $region1: #{tpu_custom_call.1} parent=0
    #allocation2 [shape = 'u8[1024]{0}', space=vmem, size = 0x400, scoped, tag = 'input window, operand 0, single buffered']
    #allocation3 [shape = 's32[1]{0}', space=sflag, size = 0x4, scoped, tag = 'scoped memory for tpu_custom_call.1']
    #allocation4 [shape = 's32[1]{0}', space=sflag, size = 0x4, scoped, tag = 'scoped memory for tpu_custom_call.1']
    #allocation5 [shape = 'u8[16384]{0}', space=vmem, size = 0x4000, scoped, tag = 'input window, operand 4, single buffered']
    #allocation6 [shape = 's32[1]{0}', space=sflag, size = 0x4, scoped, tag = 'scoped memory for tpu_custom_call.1']
    #allocation7 [shape = 'u8[1024]{0}', space=vmem, size = 0x400, scoped, tag = 'output window, operand 0, single buffered']
    #allocation8 [shape = 'u8[1024]{0}', space=vmem, size = 0x400, scoped, tag = 'output window, operand 1, single buffered']
    #allocation9 [shape = 's32[1]{0}', space=sflag, size = 0x4, scoped, tag = 'scoped memory for tpu_custom_call.1']
    %15 = vsyncpa [#allocation3], 0
    %16 = vsyncpa [#allocation6], 0
    %17 = vsyncpa [#allocation4], 0
    %18 = vsyncpa [#allocation9], 0
    // Predicated region
    $region2: #{tpu_custom_call.1} parent=1 // pred_check
      _
    $region3: #{tpu_custom_call.1} parent=1 // pred_check_branch
      %20 = sbr.rel (0) target = $region5
    $region4: #{tpu_custom_call.1} parent=1 // pred_region
      %s22 = ssub.s32 32, 32
      %23 = vsyncadd [#allocation3], %s22
      %s25 = sshll.u32 [#allocation2], 4
      %s26 = int_to_ptr.vmem [resolvable:$true] %s25
      %28 = dma.hbm_to_vmem [thread:$0]  %s0, 32, %s26, [#allocation3]
    $region5: #{tpu_custom_call.1} parent=1 // pred_fallthru
      _
    // Predicated region
    $region6: #{tpu_custom_call.1} parent=1 // pred_check
      _
    $region7: #{tpu_custom_call.1} parent=1 // pred_check_branch
      %30 = sbr.rel (0) target = $region9
    $region8: #{tpu_custom_call.1} parent=1 // pred_region
      _
    $region9: #{tpu_custom_call.1} parent=1 // pred_fallthru
      _
    // Predicated region
    $region10: #{tpu_custom_call.1} parent=1 // pred_check
      _
    $region11: #{tpu_custom_call.1} parent=1 // pred_check_branch
      %32 = sbr.rel (0) target = $region13
    $region12: #{tpu_custom_call.1} parent=1 // pred_region
      _
    $region13: #{tpu_custom_call.1} parent=1 // pred_fallthru
      _
    // Predicated region
    $region14: #{tpu_custom_call.1} parent=1 // pred_check
      _
    $region15: #{tpu_custom_call.1} parent=1 // pred_check_branch
      %34 = sbr.rel (0) target = $region17
    $region16: #{tpu_custom_call.1} parent=1 // pred_region
      _
    $region17: #{tpu_custom_call.1} parent=1 // pred_fallthru
      _
    // Predicated region
    $region18: #{tpu_custom_call.1} parent=1 // pred_check
      _
    $region19: #{tpu_custom_call.1} parent=1 // pred_check_branch
      %36 = sbr.rel (0) target = $region21
    $region20: #{tpu_custom_call.1} parent=1 // pred_region
      %s38 = ssub.s32 512, 512
      %39 = vsyncadd [#allocation6], %s38
      %s40 = sshll.u32 [#allocation5], 4
      %s41 = int_to_ptr.vmem [resolvable:$true] %s40
      %46 = dma.hbm_to_vmem [thread:$0]  %s4, 512, %s41, [#allocation6], 128, 128, 8
    $region21: #{tpu_custom_call.1} parent=1 // pred_fallthru
      _
    // Predicated region
    $region22: #{tpu_custom_call.1} parent=1 // pred_check
      _
    $region23: #{tpu_custom_call.1} parent=1 // pred_check_branch
      %48 = sbr.rel (0) target = $region25
    $region24: #{tpu_custom_call.1} parent=1 // pred_region
      _
    $region25: #{tpu_custom_call.1} parent=1 // pred_fallthru
      _
    // Predicated region
    $region26: #{tpu_custom_call.1} parent=1 // pred_check
      _
    $region27: #{tpu_custom_call.1} parent=1 // pred_check_branch
      %50 = sbr.rel (0) target = $region29
    $region28: #{tpu_custom_call.1} parent=1 // pred_region
      _
    $region29: #{tpu_custom_call.1} parent=1 // pred_fallthru
      _
    // Predicated region
    $region30: #{tpu_custom_call.1} parent=1 // pred_check
      _
    $region31: #{tpu_custom_call.1} parent=1 // pred_check_branch
      %52 = sbr.rel (0) target = $region33
    $region32: #{tpu_custom_call.1} parent=1 // pred_region
      _
    $region33: #{tpu_custom_call.1} parent=1 // pred_fallthru
      _
    // Predicated region
    $region34: #{tpu_custom_call.1} parent=1 // pred_check
      _
    $region35: #{tpu_custom_call.1} parent=1 // pred_check_branch
      %54 = sbr.rel (0) target = $region37
    $region36: #{tpu_custom_call.1} parent=1 // pred_region
      %55 = dma.done [#allocation3], 32
    $region37: #{tpu_custom_call.1} parent=1 // pred_fallthru
      _
    // Predicated region
    $region38: #{tpu_custom_call.1} parent=1 // pred_check
      _
    $region39: #{tpu_custom_call.1} parent=1 // pred_check_branch
      %57 = sbr.rel (0) target = $region41
    $region40: #{tpu_custom_call.1} parent=1 // pred_region
      %58 = dma.done [#allocation6], 512
    $region41: #{tpu_custom_call.1} parent=1 // pred_fallthru
      _
    %v59 = vld [vmem:[%s1] sm:$0xff]
    %v60 = vld [vmem:[%s1 + $0x8] sm:$0xff]
    %v61 = vld [vmem:[%s1 + $0x10] sm:$0xff]
    %v62 = vld [vmem:[%s1 + $0x18] sm:$0xff]
    %v63 = vld [vmem:[#allocation5] sm:$0xff]
    %v64 = vld [vmem:[#allocation5 + $0x8] sm:$0xff]
    %v65 = vld [vmem:[#allocation5 + $0x10] sm:$0xff]
    %v66 = vld [vmem:[#allocation5 + $0x18] sm:$0xff]
    %v67 = vld [vmem:[#allocation2] sm:$0x3]
    %v68 = vld [vmem:[%s3] sm:$0xff]
    %v69 = vld [vmem:[%s3 + $0x8] sm:$0xff]
    %vm70 = vcmask 130048
    %v72 = vsel %vm70, %v67, 0
    %74 = vmatprep.subr.mxu0 0.0
    %75 = vmatpush1.msra.mxu0 %v68
    %76 = vmatprep.subr.mxu0 0.0
    %77 = vmatpush1.msra.mxu0 %v69
    %78 = vmatprep.subr.mxu0 0.0
    %79 = vmatpush1.msra.mxu0 0.0
    %80 = vmatprep.subr.mxu0 0.0
    %81 = vmatpush1.msra.mxu0 0.0
    %82 = vmatprep.subr.mxu0 0.0
    %83 = vmatpush1.msra.mxu0 0.0
    %84 = vmatprep.subr.mxu0 0.0
    %85 = vmatpush1.msra.mxu0 0.0
    %86 = vmatprep.subr.mxu0 0.0
    %87 = vmatpush1.msra.mxu0 0.0
    %88 = vmatprep.subr.mxu0 0.0
    %89 = vmatpush1.msra.mxu0 0.0
    %90 = vmatprep.subr.mxu0 0.0
    %91 = vmatpush1.msra.mxu0 0.0
    %92 = vmatprep.subr.mxu0 0.0
    %93 = vmatpush1.msra.mxu0 0.0
    %94 = vmatprep.subr.mxu0 0.0
    %95 = vmatpush1.msra.mxu0 0.0
    %96 = vmatprep.subr.mxu0 0.0
    %97 = vmatpush1.msra.mxu0 0.0
    %98 = vmatprep.subr.mxu0 0.0
    %99 = vmatpush1.msra.mxu0 0.0
    %100 = vmatprep.subr.mxu0 0.0
    %101 = vmatpush1.msra.mxu0 0.0
    %102 = vmatprep.subr.mxu0 0.0
    %103 = vmatpush1.msra.mxu0 0.0
    %104 = vmatprep.subr.mxu0 0.0
    %105 = vmatpush1.msra.mxu0 0.0
    %106 = vmatprep.subr.mxu0 0.0
    %107 = vmatpush1.msra.mxu0 0.0
    %108 = vmatprep.subr.mxu0 0.0
    %109 = vmatpush1.msra.mxu0 0.0
    %110 = vmatprep.subr.mxu0 0.0
    %111 = vmatpush1.msra.mxu0 0.0
    %112 = vmatprep.subr.mxu0 0.0
    %113 = vmatpush1.msra.mxu0 0.0
    %114 = vmatprep.subr.mxu0 0.0
    %115 = vmatpush1.msra.mxu0 0.0
    %116 = vmatprep.subr.mxu0 0.0
    %117 = vmatpush1.msra.mxu0 0.0
    %118 = vmatprep.subr.mxu0 0.0
    %119 = vmatpush1.msra.mxu0 0.0
    %120 = vmatprep.subr.mxu0 0.0
    %121 = vmatpush1.msra.mxu0 0.0
    %122 = vmatprep.subr.mxu0 0.0
    %123 = vmatpush1.msra.mxu0 0.0
    %124 = vmatprep.subr.mxu0 0.0
    %125 = vmatpush1.msra.mxu0 0.0
    %126 = vmatprep.subr.mxu0 0.0
    %127 = vmatpush1.msra.mxu0 0.0
    %128 = vmatprep.subr.mxu0 0.0
    %129 = vmatpush1.msra.mxu0 0.0
    %130 = vmatprep.subr.mxu0 0.0
    %131 = vmatpush1.msra.mxu0 0.0
    %132 = vmatprep.subr.mxu0 0.0
    %133 = vmatpush1.msra.mxu0 0.0
    %134 = vmatprep.subr.mxu0 0.0
    %135 = vmatpush1.msra.mxu0 0.0
    %136 = vmatprep.subr.mxu0 0.0
    %137 = vmatpush1.msra.mxu0 0.0
    %138 = vmatprep.mubr.f32.mxu0 0.0
    %139 = vmatmul.mubr.f32.gmra.mrb[0].mxu0 %v72
    %v140 = vpop.f32.mrb[0].mxu0
    %v141 = vadd.f32 0.0, %v140
    %v142 = vpop.f32.mrb[0].mxu0
    %143 = vdwg.mxu0
    %v144 = vld [vmem:[%s2] sm:$0xff]
    %v145 = vld [vmem:[%s2 + $0x8] sm:$0xff]
    %v146 = vld [vmem:[%s2 + $0x10] sm:$0xff]
    %v147 = vld [vmem:[%s2 + $0x18] sm:$0xff]
    %v148 = vld [vmem:[%s5] sm:$0x1f]
    %vm149 = vcmask 39936
    %v151 = vsel %vm149, %v144, 0
    %v154 = vsel %vm149, %v145, 0
    %v157 = vsel %vm149, %v146, 0
    %v160 = vsel %vm149, %v147, 0
    %vm162 = vcmask 1044480
    %v164 = vsel %vm162, %v148, 0
    %166 = vmatprep.subr.mxu0 0.0
    %167 = vmatpush1.msra.mxu0 %v164
    %168 = vmatprep.subr.mxu0 0.0
    %169 = vmatpush1.msra.mxu0 0.0
    %170 = vmatprep.subr.mxu0 0.0
    %171 = vmatpush1.msra.mxu0 0.0
    %172 = vmatprep.subr.mxu0 0.0
    %173 = vmatpush1.msra.mxu0 0.0
    %174 = vmatprep.subr.mxu0 0.0
    %175 = vmatpush1.msra.mxu0 0.0
    %176 = vmatprep.subr.mxu0 0.0
    %177 = vmatpush1.msra.mxu0 0.0
    %178 = vmatprep.subr.mxu0 0.0
    %179 = vmatpush1.msra.mxu0 0.0
    %180 = vmatprep.subr.mxu0 0.0
    %181 = vmatpush1.msra.mxu0 0.0
    %182 = vmatprep.subr.mxu0 0.0
    %183 = vmatpush1.msra.mxu0 0.0
    %184 = vmatprep.subr.mxu0 0.0
    %185 = vmatpush1.msra.mxu0 0.0
    %186 = vmatprep.subr.mxu0 0.0
    %187 = vmatpush1.msra.mxu0 0.0
    %188 = vmatprep.subr.mxu0 0.0
    %189 = vmatpush1.msra.mxu0 0.0
    %190 = vmatprep.subr.mxu0 0.0
    %191 = vmatpush1.msra.mxu0 0.0
    %192 = vmatprep.subr.mxu0 0.0
    %193 = vmatpush1.msra.mxu0 0.0
    %194 = vmatprep.subr.mxu0 0.0
    %195 = vmatpush1.msra.mxu0 0.0
    %196 = vmatprep.subr.mxu0 0.0
    %197 = vmatpush1.msra.mxu0 0.0
    %198 = vmatprep.subr.mxu0 0.0
    %199 = vmatpush1.msra.mxu0 0.0
    %200 = vmatprep.subr.mxu0 0.0
    %201 = vmatpush1.msra.mxu0 0.0
    %202 = vmatprep.subr.mxu0 0.0
    %203 = vmatpush1.msra.mxu0 0.0
    %204 = vmatprep.subr.mxu0 0.0
    %205 = vmatpush1.msra.mxu0 0.0
    %206 = vmatprep.subr.mxu0 0.0
    %207 = vmatpush1.msra.mxu0 0.0
    %208 = vmatprep.subr.mxu0 0.0
    %209 = vmatpush1.msra.mxu0 0.0
    %210 = vmatprep.subr.mxu0 0.0
    %211 = vmatpush1.msra.mxu0 0.0
    %212 = vmatprep.subr.mxu0 0.0
    %213 = vmatpush1.msra.mxu0 0.0
    %214 = vmatprep.subr.mxu0 0.0
    %215 = vmatpush1.msra.mxu0 0.0
    %216 = vmatprep.subr.mxu0 0.0
    %217 = vmatpush1.msra.mxu0 0.0
    %218 = vmatprep.subr.mxu0 0.0
    %219 = vmatpush1.msra.mxu0 0.0
    %220 = vmatprep.subr.mxu0 0.0
    %221 = vmatpush1.msra.mxu0 0.0
    %222 = vmatprep.subr.mxu0 0.0
    %223 = vmatpush1.msra.mxu0 0.0
    %224 = vmatprep.subr.mxu0 0.0
    %225 = vmatpush1.msra.mxu0 0.0
    %226 = vmatprep.subr.mxu0 0.0
    %227 = vmatpush1.msra.mxu0 0.0
    %228 = vmatprep.subr.mxu0 0.0
    %229 = vmatpush1.msra.mxu0 0.0
    %230 = vmatprep.mubr.f32.mxu0 0.0
    %231 = vmatmul.mubr.f32.gmra.mrb[0].mxu0 %v151
    %v232 = vpop.f32.mrb[0].mxu0
    %v233 = vadd.f32 0.0, %v232
    %v234 = vpop.f32.mrb[0].mxu0
    %235 = vmatprep.mubr.f32.mxu0 0.0
    %236 = vmatmul.mubr.f32.gmra.mrb[0].mxu0 %v154
    %v237 = vpop.f32.mrb[0].mxu0
    %v238 = vadd.f32 0.0, %v237
    %v239 = vpop.f32.mrb[0].mxu0
    %240 = vmatprep.mubr.f32.mxu0 0.0
    %241 = vmatmul.mubr.f32.gmra.mrb[0].mxu0 %v157
    %v242 = vpop.f32.mrb[0].mxu0
    %v243 = vadd.f32 0.0, %v242
    %v244 = vpop.f32.mrb[0].mxu0
    %245 = vmatprep.mubr.f32.mxu0 0.0
    %246 = vmatmul.mubr.f32.gmra.mrb[0].mxu0 %v160
    %v247 = vpop.f32.mrb[0].mxu0
    %v248 = vadd.f32 0.0, %v247
    %v249 = vpop.f32.mrb[0].mxu0
    %250 = vdwg.mxu0
    %vm251 = vcmask 261120
    %v253 = vsel %vm251, %v59, 0
    %v256 = vsel %vm251, %v60, 0
    %v259 = vsel %vm251, %v61, 0
    %v262 = vsel %vm251, %v62, 0
    %264 = vmatprep.subr.mxu0 0.0
    %265 = vmatpush1.msra.mxu0 %v63
    %266 = vmatprep.subr.mxu0 0.0
    %267 = vmatpush1.msra.mxu0 %v64
    %268 = vmatprep.subr.mxu0 0.0
    %269 = vmatpush1.msra.mxu0 %v65
    %270 = vmatprep.subr.mxu0 0.0
    %271 = vmatpush1.msra.mxu0 %v66
    %272 = vmatprep.subr.mxu0 0.0
    %273 = vmatpush1.msra.mxu0 0.0
    %274 = vmatprep.subr.mxu0 0.0
    %275 = vmatpush1.msra.mxu0 0.0
    %276 = vmatprep.subr.mxu0 0.0
    %277 = vmatpush1.msra.mxu0 0.0
    %278 = vmatprep.subr.mxu0 0.0
    %279 = vmatpush1.msra.mxu0 0.0
    %280 = vmatprep.subr.mxu0 0.0
    %281 = vmatpush1.msra.mxu0 0.0
    %282 = vmatprep.subr.mxu0 0.0
    %283 = vmatpush1.msra.mxu0 0.0
    %284 = vmatprep.subr.mxu0 0.0
    %285 = vmatpush1.msra.mxu0 0.0
    %286 = vmatprep.subr.mxu0 0.0
    %287 = vmatpush1.msra.mxu0 0.0
    %288 = vmatprep.subr.mxu0 0.0
    %289 = vmatpush1.msra.mxu0 0.0
    %290 = vmatprep.subr.mxu0 0.0
    %291 = vmatpush1.msra.mxu0 0.0
    %292 = vmatprep.subr.mxu0 0.0
    %293 = vmatpush1.msra.mxu0 0.0
    %294 = vmatprep.subr.mxu0 0.0
    %295 = vmatpush1.msra.mxu0 0.0
    %296 = vmatprep.subr.mxu0 0.0
    %297 = vmatpush1.msra.mxu0 0.0
    %298 = vmatprep.subr.mxu0 0.0
    %299 = vmatpush1.msra.mxu0 0.0
    %300 = vmatprep.subr.mxu0 0.0
    %301 = vmatpush1.msra.mxu0 0.0
    %302 = vmatprep.subr.mxu0 0.0
    %303 = vmatpush1.msra.mxu0 0.0
    %304 = vmatprep.subr.mxu0 0.0
    %305 = vmatpush1.msra.mxu0 0.0
    %306 = vmatprep.subr.mxu0 0.0
    %307 = vmatpush1.msra.mxu0 0.0
    %308 = vmatprep.subr.mxu0 0.0
    %309 = vmatpush1.msra.mxu0 0.0
    %310 = vmatprep.subr.mxu0 0.0
    %311 = vmatpush1.msra.mxu0 0.0
    %312 = vmatprep.subr.mxu0 0.0
    %313 = vmatpush1.msra.mxu0 0.0
    %314 = vmatprep.subr.mxu0 0.0
    %315 = vmatpush1.msra.mxu0 0.0
    %316 = vmatprep.subr.mxu0 0.0
    %317 = vmatpush1.msra.mxu0 0.0
    %318 = vmatprep.subr.mxu0 0.0
    %319 = vmatpush1.msra.mxu0 0.0
    %320 = vmatprep.subr.mxu0 0.0
    %321 = vmatpush1.msra.mxu0 0.0
    %322 = vmatprep.subr.mxu0 0.0
    %323 = vmatpush1.msra.mxu0 0.0
    %324 = vmatprep.subr.mxu0 0.0
    %325 = vmatpush1.msra.mxu0 0.0
    %326 = vmatprep.subr.mxu0 0.0
    %327 = vmatpush1.msra.mxu0 0.0
    %328 = vmatprep.mubr.f32.mxu0 0.0
    %329 = vmatmul.mubr.f32.gmra.mrb[0].mxu0 %v253
    %v330 = vpop.f32.mrb[0].mxu0
    %v331 = vadd.f32 %v233, %v330
    %v332 = vpop.f32.mrb[0].mxu0
    %333 = vmatprep.mubr.f32.mxu0 0.0
    %334 = vmatmul.mubr.f32.gmra.mrb[0].mxu0 %v256
    %v335 = vpop.f32.mrb[0].mxu0
    %v336 = vadd.f32 %v238, %v335
    %v337 = vpop.f32.mrb[0].mxu0
    %338 = vmatprep.mubr.f32.mxu0 0.0
    %339 = vmatmul.mubr.f32.gmra.mrb[0].mxu0 %v259
    %v340 = vpop.f32.mrb[0].mxu0
    %v341 = vadd.f32 %v243, %v340
    %v342 = vpop.f32.mrb[0].mxu0
    %343 = vmatprep.mubr.f32.mxu0 0.0
    %344 = vmatmul.mubr.f32.gmra.mrb[0].mxu0 %v262
    %v345 = vpop.f32.mrb[0].mxu0
    %v346 = vadd.f32 %v248, %v345
    %v347 = vpop.f32.mrb[0].mxu0
    %348 = vdwg.mxu0
    %v351 = vunpack.c.l.s4 1966171168
    %v352 = vunpack.c.0.s8 %v351
    %v353 = vlaneseq
    %v354 = vshrl.u32 %v353, 7
    %v355 = vsub.s32 %v352, %v354
    %v356 = vrot.slane %v141, %v355
    %v357 = vcombine.high %v356, %v356
    %v359 = vunpack.c.l.s4 1966171168
    %v360 = vunpack.c.0.s8 %v359
    %v361 = vlaneseq
    %v362 = vshrl.u32 %v361, 7
    %v363 = vsub.s32 %v360, %v362
    %v364 = vrot.slane %v356, %v363
    %v366 = vunpack.c.l.s4 1966171168
    %v367 = vunpack.c.0.s8 %v366
    %v368 = vlaneseq
    %v369 = vshrl.u32 %v368, 7
    %v370 = vsub.s32 %v367, %v369
    %v371 = vrot.slane %v357, %v370
    %v372 = vlaneseq
    %v373 = vshrl.u32 %v372, 7
    %v374 = vsub.s32 0, %v373
    %v375 = vrot.slane %v364, %v374
    %v376 = vlaneseq
    %v377 = vshrl.u32 %v376, 7
    %v378 = vsub.s32 0, %v377
    %v379 = vrot.slane %v371, %v378
    %v382 = vadd.f32 %v331, %v375
    %v383 = vadd.f32 %v336, %v375
    %v384 = vadd.f32 %v341, %v379
    %v385 = vadd.f32 %v346, %v379
    %v386 = vld [vmem:[%s7] sm:$0x1]
    %v388 = vlaneseq
    %v389 = vshrl.u32 %v388, 7
    %v390 = vsub.s32 0, %v389
    %v391 = vrot.slane %v386, %v390
    %v393 = vadd.f32 %v382, %v391
    %v394 = vadd.f32 %v383, %v391
    %v395 = vadd.f32 %v384, %v391
    %v396 = vadd.f32 %v385, %v391
    %v397 = vtanh.pop %v393
    %v398 = vtanh.pop %v394
    %v399 = vtanh.pop %v395
    %v400 = vtanh.pop %v396
    %v401 = vld [vmem:[%s6] sm:$0x1]
    %v403 = vlaneseq
    %v404 = vshrl.u32 %v403, 7
    %v405 = vsub.s32 0, %v404
    %v406 = vrot.slane %v401, %v405
    %v408 = vmul.f32 %v397, %v406
    %v409 = vmul.f32 %v398, %v406
    %v410 = vmul.f32 %v399, %v406
    %v411 = vmul.f32 %v400, %v406
    %v412 = vsel %vm251, %v408, 0.0
    %413 = vadd.xlane.f32.xlu0 %v412
    %v414 = vpop.xlane.xlu0 %413
    %v415 = vsel %vm251, %v409, 0.0
    %416 = vadd.xlane.f32.xlu0 %v415
    %v417 = vpop.xlane.xlu0 %416
    %v418 = vsel %vm251, %v410, 0.0
    %419 = vadd.xlane.f32.xlu0 %v418
    %v420 = vpop.xlane.xlu0 %419
    %v421 = vsel %vm251, %v411, 0.0
    %422 = vadd.xlane.f32.xlu0 %v421
    %v423 = vpop.xlane.xlu0 %422
    %v428 = vlaneseq
    %v429 = vand.u32 %v428, 127
    %v430 = vlaneseq
    %v431 = vshrl.u32 %v430, 7
    %v432 = vsub.s32 %v429, %v431
    %v433 = vrot.slane %v414, %v432
    %v434 = vadd.s32 %v429, 4294967288
    %v435 = vlaneseq
    %v436 = vshrl.u32 %v435, 7
    %v437 = vsub.s32 %v434, %v436
    %v438 = vrot.slane %v417, %v437
    %vm439 = vcmask 130112
    %v440 = vsel %vm439, %v438, %v433
    %v441 = vlaneseq
    %v442 = vshrl.u32 %v441, 7
    %v443 = vsub.s32 %v429, %v442
    %v444 = vrot.slane %v420, %v443
    %v445 = vlaneseq
    %v446 = vshrl.u32 %v445, 7
    %v447 = vsub.s32 %v434, %v446
    %v448 = vrot.slane %v423, %v447
    %v449 = vsel %vm439, %v448, %v444
    %vm450 = vcmask 1041409
    %v451 = vsel %vm450, %v449, %v440
    %vm453 = vcmask 123904
    %v454 = vsel %vm453, %v451, -inf
    %455 = vmax.xlane.f32.xlu0 %v454
    %v456 = vpop.xlane.xlu0 %455
    %v458 = vlaneseq
    %v459 = vshrl.u32 %v458, 7
    %v460 = vsub.s32 0, %v459
    %v461 = vrot.slane %v456, %v460
    %v462 = vlaneseq
    %v463 = vshrl.u32 %v462, 7
    %v464 = vsub.s32 1, %v463
    %v465 = vrot.slane %v456, %v464
    %v468 = vsub.f32 %v414, %v461
    %v469 = vsub.f32 %v417, %v461
    %v470 = vsub.f32 %v420, %v465
    %v471 = vsub.f32 %v423, %v465
    %v472 = vmul.f32 %v468, 1.442695
    %v473 = vpow.pop %v472
    %v474 = vmul.f32 %v469, 1.442695
    %v475 = vpow.pop %v474
    %v476 = vmul.f32 %v470, 1.442695
    %v477 = vpow.pop %v476
    %v478 = vmul.f32 %v471, 1.442695
    %v479 = vpow.pop %v478
    %484 = vset.pattern.permute.xlu0 0
    %485 = vperm.xlu0 %484, %v473
    %v486 = vpop.permute.xlu0 %485
    %487 = vset.pattern.permute.xlu0 0
    %488 = vperm.xlu0 %487, %v475
    %v489 = vpop.permute.xlu0 %488
    %490 = vset.pattern.permute.xlu0 0
    %491 = vperm.xlu0 %490, %v477
    %v492 = vpop.permute.xlu0 %491
    %493 = vset.pattern.permute.xlu0 0
    %494 = vperm.xlu0 %493, %v479
    %v495 = vpop.permute.xlu0 %494
    %v496 = vlaneseq
    %v497 = vshrl.u32 %v496, 7
    %v498 = vsub.s32 %v429, %v497
    %v499 = vrot.slane %v486, %v498
    %v500 = vlaneseq
    %v501 = vshrl.u32 %v500, 7
    %v502 = vsub.s32 %v434, %v501
    %v503 = vrot.slane %v489, %v502
    %v504 = vsel %vm439, %v503, %v499
    %v505 = vlaneseq
    %v506 = vshrl.u32 %v505, 7
    %v507 = vsub.s32 %v429, %v506
    %v508 = vrot.slane %v492, %v507
    %v509 = vlaneseq
    %v510 = vshrl.u32 %v509, 7
    %v511 = vsub.s32 %v434, %v510
    %v512 = vrot.slane %v495, %v511
    %v513 = vsel %vm439, %v512, %v508
    %v514 = vsel %vm450, %v513, %v504
    %v516 = vsel %vm453, %v514, 0.0
    %517 = vadd.xlane.f32.xlu0 %v516
    %v518 = vpop.xlane.xlu0 %517
    %v519 = vrcp.pop %v518
    %v521 = vlaneseq
    %v522 = vshrl.u32 %v521, 7
    %v523 = vsub.s32 0, %v522
    %v524 = vrot.slane %v519, %v523
    %v525 = vlaneseq
    %v526 = vshrl.u32 %v525, 7
    %v527 = vsub.s32 1, %v526
    %v528 = vrot.slane %v519, %v527
    %v531 = vmul.f32 %v473, %v524
    %v532 = vmul.f32 %v475, %v524
    %v533 = vmul.f32 %v477, %v528
    %v534 = vmul.f32 %v479, %v528
    %537 = vset.pattern.permute.xlu0 0
    %538 = vperm.xlu0 %537, %v531
    %v539 = vpop.permute.xlu0 %538
    %540 = vset.pattern.permute.xlu0 0
    %541 = vperm.xlu0 %540, %v532
    %v542 = vpop.permute.xlu0 %541
    %v543 = vlaneseq
    %v544 = vshrl.u32 %v543, 7
    %v545 = vsub.s32 %v429, %v544
    %v546 = vrot.slane %v539, %v545
    %v547 = vlaneseq
    %v548 = vshrl.u32 %v547, 7
    %v549 = vsub.s32 %v434, %v548
    %v550 = vrot.slane %v542, %v549
    %v551 = vsel %vm439, %v550, %v546
    %v552 = vsel %vm70, %v551, 0
    %554 = vmatprep.subr.mxu0 0.0
    %555 = vmatpush1.msra.mxu0 %v59
    %556 = vmatprep.subr.mxu0 0.0
    %557 = vmatpush1.msra.mxu0 %v60
    %558 = vmatprep.subr.mxu0 0.0
    %559 = vmatpush1.msra.mxu0 0.0
    %560 = vmatprep.subr.mxu0 0.0
    %561 = vmatpush1.msra.mxu0 0.0
    %562 = vmatprep.subr.mxu0 0.0
    %563 = vmatpush1.msra.mxu0 0.0
    %564 = vmatprep.subr.mxu0 0.0
    %565 = vmatpush1.msra.mxu0 0.0
    %566 = vmatprep.subr.mxu0 0.0
    %567 = vmatpush1.msra.mxu0 0.0
    %568 = vmatprep.subr.mxu0 0.0
    %569 = vmatpush1.msra.mxu0 0.0
    %570 = vmatprep.subr.mxu0 0.0
    %571 = vmatpush1.msra.mxu0 0.0
    %572 = vmatprep.subr.mxu0 0.0
    %573 = vmatpush1.msra.mxu0 0.0
    %574 = vmatprep.subr.mxu0 0.0
    %575 = vmatpush1.msra.mxu0 0.0
    %576 = vmatprep.subr.mxu0 0.0
    %577 = vmatpush1.msra.mxu0 0.0
    %578 = vmatprep.subr.mxu0 0.0
    %579 = vmatpush1.msra.mxu0 0.0
    %580 = vmatprep.subr.mxu0 0.0
    %581 = vmatpush1.msra.mxu0 0.0
    %582 = vmatprep.subr.mxu0 0.0
    %583 = vmatpush1.msra.mxu0 0.0
    %584 = vmatprep.subr.mxu0 0.0
    %585 = vmatpush1.msra.mxu0 0.0
    %586 = vmatprep.subr.mxu0 0.0
    %587 = vmatpush1.msra.mxu0 0.0
    %588 = vmatprep.subr.mxu0 0.0
    %589 = vmatpush1.msra.mxu0 0.0
    %590 = vmatprep.subr.mxu0 0.0
    %591 = vmatpush1.msra.mxu0 0.0
    %592 = vmatprep.subr.mxu0 0.0
    %593 = vmatpush1.msra.mxu0 0.0
    %594 = vmatprep.subr.mxu0 0.0
    %595 = vmatpush1.msra.mxu0 0.0
    %596 = vmatprep.subr.mxu0 0.0
    %597 = vmatpush1.msra.mxu0 0.0
    %598 = vmatprep.subr.mxu0 0.0
    %599 = vmatpush1.msra.mxu0 0.0
    %600 = vmatprep.subr.mxu0 0.0
    %601 = vmatpush1.msra.mxu0 0.0
    %602 = vmatprep.subr.mxu0 0.0
    %603 = vmatpush1.msra.mxu0 0.0
    %604 = vmatprep.subr.mxu0 0.0
    %605 = vmatpush1.msra.mxu0 0.0
    %606 = vmatprep.subr.mxu0 0.0
    %607 = vmatpush1.msra.mxu0 0.0
    %608 = vmatprep.subr.mxu0 0.0
    %609 = vmatpush1.msra.mxu0 0.0
    %610 = vmatprep.subr.mxu0 0.0
    %611 = vmatpush1.msra.mxu0 0.0
    %612 = vmatprep.subr.mxu0 0.0
    %613 = vmatpush1.msra.mxu0 0.0
    %614 = vmatprep.subr.mxu0 0.0
    %615 = vmatpush1.msra.mxu0 0.0
    %616 = vmatprep.subr.mxu0 0.0
    %617 = vmatpush1.msra.mxu0 0.0
    %618 = vmatprep.mubr.f32.mxu0 0.0
    %619 = vmatmul.mubr.f32.gmra.mrb[0].mxu0 %v552
    %v620 = vpop.f32.mrb[0].mxu0
    %v621 = vadd.f32 0.0, %v620
    %v622 = vpop.f32.mrb[0].mxu0
    %623 = vdwg.mxu0
    %626 = vset.pattern.permute.xlu0 0
    %627 = vperm.xlu0 %626, %v533
    %v628 = vpop.permute.xlu0 %627
    %629 = vset.pattern.permute.xlu0 0
    %630 = vperm.xlu0 %629, %v534
    %v631 = vpop.permute.xlu0 %630
    %v632 = vlaneseq
    %v633 = vshrl.u32 %v632, 7
    %v634 = vsub.s32 %v429, %v633
    %v635 = vrot.slane %v628, %v634
    %v636 = vlaneseq
    %v637 = vshrl.u32 %v636, 7
    %v638 = vsub.s32 %v434, %v637
    %v639 = vrot.slane %v631, %v638
    %v640 = vsel %vm439, %v639, %v635
    %v641 = vsel %vm70, %v640, 0
    %643 = vmatprep.subr.mxu0 0.0
    %644 = vmatpush1.msra.mxu0 %v61
    %645 = vmatprep.subr.mxu0 0.0
    %646 = vmatpush1.msra.mxu0 %v62
    %647 = vmatprep.subr.mxu0 0.0
    %648 = vmatpush1.msra.mxu0 0.0
    %649 = vmatprep.subr.mxu0 0.0
    %650 = vmatpush1.msra.mxu0 0.0
    %651 = vmatprep.subr.mxu0 0.0
    %652 = vmatpush1.msra.mxu0 0.0
    %653 = vmatprep.subr.mxu0 0.0
    %654 = vmatpush1.msra.mxu0 0.0
    %655 = vmatprep.subr.mxu0 0.0
    %656 = vmatpush1.msra.mxu0 0.0
    %657 = vmatprep.subr.mxu0 0.0
    %658 = vmatpush1.msra.mxu0 0.0
    %659 = vmatprep.subr.mxu0 0.0
    %660 = vmatpush1.msra.mxu0 0.0
    %661 = vmatprep.subr.mxu0 0.0
    %662 = vmatpush1.msra.mxu0 0.0
    %663 = vmatprep.subr.mxu0 0.0
    %664 = vmatpush1.msra.mxu0 0.0
    %665 = vmatprep.subr.mxu0 0.0
    %666 = vmatpush1.msra.mxu0 0.0
    %667 = vmatprep.subr.mxu0 0.0
    %668 = vmatpush1.msra.mxu0 0.0
    %669 = vmatprep.subr.mxu0 0.0
    %670 = vmatpush1.msra.mxu0 0.0
    %671 = vmatprep.subr.mxu0 0.0
    %672 = vmatpush1.msra.mxu0 0.0
    %673 = vmatprep.subr.mxu0 0.0
    %674 = vmatpush1.msra.mxu0 0.0
    %675 = vmatprep.subr.mxu0 0.0
    %676 = vmatpush1.msra.mxu0 0.0
    %677 = vmatprep.subr.mxu0 0.0
    %678 = vmatpush1.msra.mxu0 0.0
    %679 = vmatprep.subr.mxu0 0.0
    %680 = vmatpush1.msra.mxu0 0.0
    %681 = vmatprep.subr.mxu0 0.0
    %682 = vmatpush1.msra.mxu0 0.0
    %683 = vmatprep.subr.mxu0 0.0
    %684 = vmatpush1.msra.mxu0 0.0
    %685 = vmatprep.subr.mxu0 0.0
    %686 = vmatpush1.msra.mxu0 0.0
    %687 = vmatprep.subr.mxu0 0.0
    %688 = vmatpush1.msra.mxu0 0.0
    %689 = vmatprep.subr.mxu0 0.0
    %690 = vmatpush1.msra.mxu0 0.0
    %691 = vmatprep.subr.mxu0 0.0
    %692 = vmatpush1.msra.mxu0 0.0
    %693 = vmatprep.subr.mxu0 0.0
    %694 = vmatpush1.msra.mxu0 0.0
    %695 = vmatprep.subr.mxu0 0.0
    %696 = vmatpush1.msra.mxu0 0.0
    %697 = vmatprep.subr.mxu0 0.0
    %698 = vmatpush1.msra.mxu0 0.0
    %699 = vmatprep.subr.mxu0 0.0
    %700 = vmatpush1.msra.mxu0 0.0
    %701 = vmatprep.subr.mxu0 0.0
    %702 = vmatpush1.msra.mxu0 0.0
    %703 = vmatprep.subr.mxu0 0.0
    %704 = vmatpush1.msra.mxu0 0.0
    %705 = vmatprep.subr.mxu0 0.0
    %706 = vmatpush1.msra.mxu0 0.0
    %707 = vmatprep.mubr.f32.mxu0 0.0
    %708 = vmatmul.mubr.f32.gmra.mrb[0].mxu0 %v641
    %v709 = vpop.f32.mrb[0].mxu0
    %v710 = vadd.f32 0.0, %v709
    %v711 = vpop.f32.mrb[0].mxu0
    %712 = vdwg.mxu0
    %v715 = vrot.slane %v710, 7
    %v716 = vsel %vm450, %v715, %v621
    %vm718 = vcmask 254976
    %719 = vst.msk [vmem:[#allocation7] sm:$0x3] %vm718, %v716
    %v720 = vsel %vm450, %v640, %v551
    %722 = vst.msk [vmem:[#allocation8] sm:$0x3] %vm453, %v720
    // Predicated region
    $region42: #{tpu_custom_call.1} parent=1 // pred_check
      _
    $region43: #{tpu_custom_call.1} parent=1 // pred_check_branch
      %724 = sbr.rel (0) target = $region45
    $region44: #{tpu_custom_call.1} parent=1 // pred_region
      %s726 = ssub.s32 32, 32
      %727 = vsyncadd [#allocation4], %s726
      %s729 = sshll.u32 [#allocation7], 4
      %s730 = int_to_ptr.vmem [resolvable:$true] %s729
      %732 = dma.vmem_to_hbm [thread:$0]  %s730, 32, %s8, [#allocation4]
    $region45: #{tpu_custom_call.1} parent=1 // pred_fallthru
      _
    // Predicated region
    $region46: #{tpu_custom_call.1} parent=1 // pred_check
      _
    $region47: #{tpu_custom_call.1} parent=1 // pred_check_branch
      %734 = sbr.rel (0) target = $region49
    $region48: #{tpu_custom_call.1} parent=1 // pred_region
      %s736 = ssub.s32 32, 32
      %737 = vsyncadd [#allocation9], %s736
      %s739 = sshll.u32 [#allocation8], 4
      %s740 = int_to_ptr.vmem [resolvable:$true] %s739
      %742 = dma.vmem_to_hbm [thread:$0]  %s740, 32, %s9, [#allocation9]
    $region49: #{tpu_custom_call.1} parent=1 // pred_fallthru
      _
    // Predicated region
    $region50: #{tpu_custom_call.1} parent=1 // pred_check
      _
    $region51: #{tpu_custom_call.1} parent=1 // pred_check_branch
      %744 = sbr.rel (0) target = $region53
    $region52: #{tpu_custom_call.1} parent=1 // pred_region
      %745 = dma.done [#allocation4], 32
    $region53: #{tpu_custom_call.1} parent=1 // pred_fallthru
      _
    // Predicated region
    $region54: #{tpu_custom_call.1} parent=1 // pred_check
      _
    $region55: #{tpu_custom_call.1} parent=1 // pred_check_branch
      %747 = sbr.rel (0) target = $region57
    $region56: #{tpu_custom_call.1} parent=1 // pred_region
      %748 = dma.done [#allocation9], 32
    $region57: #{tpu_custom_call.1} parent=1 // pred_fallthru
      _
    %749 = vsyncpa [#allocation3], 1
    %750 = vsyncpa [#allocation6], 1
    %751 = vsyncpa [#allocation4], 1
    %752 = vsyncpa [#allocation9], 1

</llo_original>
